<compile_context>
chip_gen: v7x
topology: tpu7x:2x2x1
jax: 0.10.0
libtpu: 0.0.40
codegen_flags: <defaults>
</compile_context>

<pallas_src>
import jax
import jax.numpy as jnp
import numpy as np
from jax.experimental import pallas as pl
from jax.experimental.pallas import tpu as pltpu

_LN_EPS = 1e-5  # torch.nn.LayerNorm default eps


# ----------------------------------------------------------------------------
# Pallas kernel: Linear + LayerNorm + Tanh on one batch tile.
# ----------------------------------------------------------------------------
def _rl_projection_kernel(x_ref, w_ref, bgb_ref, o_ref):
    # x_ref:   (TM, in_dim)       activation tile
    # w_ref:   (in_dim, out_dim)  Linear weight, pre-transposed (resident)
    # bgb_ref: (3, out_dim)       rows = [linear bias, LN gamma, LN beta]
    # o_ref:   (TM, out_dim)
    h = jnp.dot(x_ref[...], w_ref[...], preferred_element_type=jnp.float32)
    h = h + bgb_ref[0:1, :]                         # Linear bias (row broadcast)

    # LayerNorm over the feature (lane) axis; biased variance as in PyTorch.
    mean = jnp.mean(h, axis=-1, keepdims=True)
    c = h - mean
    var = jnp.mean(c * c, axis=-1, keepdims=True)
    inv = jax.lax.rsqrt(var + _LN_EPS)
    y = c * inv * bgb_ref[1:2, :] + bgb_ref[2:3, :]  # gamma / beta

    o_ref[...] = jnp.tanh(y).astype(o_ref.dtype)


def _round_up(n, m):
    return ((n + m - 1) // m) * m


def rl_projection_forward(x, params, *, tm_max=512):
    """x: (B, in_dim) -> (B, out_dim) = tanh(LayerNorm(x @ W^T + b))."""
    x = x.astype(jnp.float32)
    b, in_dim = x.shape
    w = params["w"]                                  # (in_dim, out_dim)
    out_dim = w.shape[1]
    # Pack bias / LayerNorm gamma / LayerNorm beta into one small tensor.
    bgb = jnp.stack([params["b"], params["gamma"], params["beta"]], axis=0)

    # Batch tile: multiple of 8 sublanes, capped at tm_max; pad batch to fit.
    tm = min(tm_max, max(8, _round_up(b, 8)))
    bp = _round_up(b, tm)
    if bp != b:
        x = jnp.pad(x, ((0, bp - b), (0, 0)))

    out = pl.pallas_call(
        _rl_projection_kernel,
        out_shape=jax.ShapeDtypeStruct((bp, out_dim), jnp.float32),
        grid=(bp // tm,),
        in_specs=[
            pl.BlockSpec((tm, in_dim), lambda i: (i, 0)),       # activation tile
            pl.BlockSpec((in_dim, out_dim), lambda i: (0, 0)),  # resident weight
            pl.BlockSpec((3, out_dim), lambda i: (0, 0)),       # resident bias/gamma/beta
        ],
        out_specs=pl.BlockSpec((tm, out_dim), lambda i: (i, 0)),
        compiler_params=pltpu.CompilerParams(
            dimension_semantics=("parallel",)),
    )(x, w, bgb)
    return out[:b]


# ----------------------------------------------------------------------------
# Deterministic parameter init mirroring the PyTorch module:
#   nn.Linear -> orthogonal weight, zero bias (weight_init)
#   nn.LayerNorm -> gamma = 1, beta = 0 (untouched by weight_init)
# ----------------------------------------------------------------------------
def _orthogonal(key, rows, cols, dtype=jnp.float32):
    """Orthogonal init of a (rows, cols) matrix, like nn.init.orthogonal_."""
    n, m = (rows, cols) if rows >= cols else (cols, rows)
    a = jax.random.normal(key, (n, m), dtype=jnp.float32)
    q, r = jnp.linalg.qr(a)
    d = jnp.sign(jnp.diagonal(r))
    q = q * d[None, :]
    if rows < cols:
        q = q.T
    return q.astype(dtype)


def make_rl_projection_params(key, in_dim, out_dim):
    # PyTorch Linear weight is (out, in); store its transpose (in, out) so the
    # kernel computes a plain x @ W.
    w_t = _orthogonal(key, out_dim, in_dim).T        # (in_dim, out_dim)
    return {
        "w": w_t,
        "b": jnp.zeros((out_dim,), jnp.float32),
        "gamma": jnp.ones((out_dim,), jnp.float32),
        "beta": jnp.zeros((out_dim,), jnp.float32),
    }


# ----------------------------------------------------------------------------
# Pure-JAX reference for correctness checking.
# ----------------------------------------------------------------------------
def rl_projection_ref(x, params):
    h = x @ params["w"] + params["b"]
    mean = jnp.mean(h, axis=-1, keepdims=True)
    var = jnp.mean((h - mean) ** 2, axis=-1, keepdims=True)
    y = (h - mean) / jnp.sqrt(var + _LN_EPS) * params["gamma"] + params["beta"]
    return jnp.tanh(y)


if __name__ == "__main__":
    # Small shapes consistent with the module: in_shape = (32,), out_dim = 32,
    # batch = 8.
    batch, in_dim, out_dim = 8, 32, 32

    key = jax.random.PRNGKey(0)
    kx, kp = jax.random.split(key, 2)

    x = jax.random.normal(kx, (batch, in_dim), dtype=jnp.float32)
    params = make_rl_projection_params(kp, in_dim, out_dim)

    y = rl_projection_forward(x, params)
    jax.block_until_ready(y)

    y_ref = rl_projection_ref(x, params)
    np.testing.assert_allclose(np.asarray(y), np.asarray(y_ref), rtol=1e-5, atol=1e-5)
    assert y.shape == (batch, out_dim)

    print("KERNEL_OK")
</pallas_src>

<mosaic_0001>
module attributes {stable_mosaic.version = 11 : i64} {
  func.func @_rl_projection_kernel(%arg0: i32, %arg1: memref<8x32xf32, #tpu.memory_space<vmem>>, %arg2: memref<32x32xf32, #tpu.memory_space<vmem>>, %arg3: memref<3x32xf32, #tpu.memory_space<vmem>>, %arg4: memref<8x32xf32, #tpu.memory_space<vmem>>) attributes {dimension_semantics = [#tpu.dimension_semantics<parallel>], iteration_bounds = array<i64: 1>, scalar_prefetch = 0 : i64, scratch_operands = 0 : i64, tpu.core_type = #tpu.core_type<tc>, window_params = [{transform_indices = @transform_0, window_bounds = array<i64: 8, 32>}, {pipeline_mode = #tpu.pipeline_mode<synchronous>, transform_indices = @transform_1, window_bounds = array<i64: 32, 32>}, {pipeline_mode = #tpu.pipeline_mode<synchronous>, transform_indices = @transform_2, window_bounds = array<i64: 3, 32>}, {transform_indices = @transform_3, window_bounds = array<i64: 8, 32>}]} {
    %c0 = arith.constant 0 : index
    %c0_0 = arith.constant 0 : index
    %0 = vector.load %arg1[%c0, %c0_0] : memref<8x32xf32, #tpu.memory_space<vmem>>, vector<8x32xf32>
    %c0_1 = arith.constant 0 : index
    %c0_2 = arith.constant 0 : index
    %1 = vector.load %arg2[%c0_1, %c0_2] : memref<32x32xf32, #tpu.memory_space<vmem>>, vector<32x32xf32>
    %cst = arith.constant dense<0.000000e+00> : vector<8x32xf32>
    %2 = tpu.matmul %0, %1, %cst {dimension_numbers = #tpu.dot_dimension_numbers<[1], [0], [0], [1], [0, 0, 1, 1], [], []>} : vector<8x32xf32>, vector<32x32xf32>, vector<8x32xf32> -> vector<8x32xf32>
    %c0_3 = arith.constant 0 : index
    %c0_4 = arith.constant 0 : index
    %3 = vector.load %arg3[%c0_3, %c0_4] : memref<3x32xf32, #tpu.memory_space<vmem>>, vector<1x32xf32>
    %4 = vector.broadcast %3 : vector<1x32xf32> to vector<8x32xf32>
    %5 = arith.addf %2, %4 : vector<8x32xf32>
    %cst_5 = arith.constant dense<0.000000e+00> : vector<8xf32>
    %6 = vector.multi_reduction <add>, %5, %cst_5 [1] : vector<8x32xf32> to vector<8xf32>
    %7 = vector.shape_cast %6 : vector<8xf32> to vector<8x1xf32>
    %cst_6 = arith.constant 3.200000e+01 : f32
    %8 = vector.broadcast %cst_6 : f32 to vector<8x1xf32>
    %9 = arith.divf %7, %8 : vector<8x1xf32>
    %10 = vector.broadcast %9 : vector<8x1xf32> to vector<8x32xf32>
    %11 = arith.subf %5, %10 : vector<8x32xf32>
    %12 = arith.mulf %11, %11 : vector<8x32xf32>
    %cst_7 = arith.constant dense<0.000000e+00> : vector<8xf32>
    %13 = vector.multi_reduction <add>, %12, %cst_7 [1] : vector<8x32xf32> to vector<8xf32>
    %14 = vector.shape_cast %13 : vector<8xf32> to vector<8x1xf32>
    %cst_8 = arith.constant 3.200000e+01 : f32
    %15 = vector.broadcast %cst_8 : f32 to vector<8x1xf32>
    %16 = arith.divf %14, %15 : vector<8x1xf32>
    %cst_9 = arith.constant 9.99999974E-6 : f32
    %17 = vector.broadcast %cst_9 : f32 to vector<8x1xf32>
    %18 = arith.addf %16, %17 : vector<8x1xf32>
    %19 = math.rsqrt %18 : vector<8x1xf32>
    %20 = vector.broadcast %19 : vector<8x1xf32> to vector<8x32xf32>
    %21 = arith.mulf %11, %20 : vector<8x32xf32>
    %c1 = arith.constant 1 : index
    %c0_10 = arith.constant 0 : index
    %22 = vector.load %arg3[%c1, %c0_10] : memref<3x32xf32, #tpu.memory_space<vmem>>, vector<1x32xf32>
    %23 = vector.broadcast %22 : vector<1x32xf32> to vector<8x32xf32>
    %24 = arith.mulf %21, %23 : vector<8x32xf32>
    %c2 = arith.constant 2 : index
    %c0_11 = arith.constant 0 : index
    %25 = vector.load %arg3[%c2, %c0_11] : memref<3x32xf32, #tpu.memory_space<vmem>>, vector<1x32xf32>
    %26 = vector.broadcast %25 : vector<1x32xf32> to vector<8x32xf32>
    %27 = arith.addf %24, %26 : vector<8x32xf32>
    %28 = math.tanh %27 : vector<8x32xf32>
    %c0_12 = arith.constant 0 : index
    %c0_13 = arith.constant 0 : index
    %29 = vector.load %arg4[%c0_12, %c0_13] : memref<8x32xf32, #tpu.memory_space<vmem>>, vector<8x32xf32>
    tpu.vector_store %arg4[%c0_12, %c0_13], %28 {strides = array<i32>} : memref<8x32xf32, #tpu.memory_space<vmem>>, vector<8x32xf32>,
    return
  }
  func.func @transform_0(%arg0: i32) -> (i32, i32) {
    %c0_i32 = arith.constant 0 : i32
    %c0_i32_0 = arith.constant 0 : i32
    return %arg0, %c0_i32 : i32, i32
  }
  func.func @transform_1(%arg0: i32) -> (i32, i32) {
    %c0_i32 = arith.constant 0 : i32
    %c0_i32_0 = arith.constant 0 : i32
    %c0_i32_1 = arith.constant 0 : i32
    return %c0_i32, %c0_i32_0 : i32, i32
  }
  func.func @transform_2(%arg0: i32) -> (i32, i32) {
    %c0_i32 = arith.constant 0 : i32
    %c0_i32_0 = arith.constant 0 : i32
    %c0_i32_1 = arith.constant 0 : i32
    return %c0_i32, %c0_i32_0 : i32, i32
  }
  func.func @transform_3(%arg0: i32) -> (i32, i32) {
    %c0_i32 = arith.constant 0 : i32
    %c0_i32_0 = arith.constant 0 : i32
    return %arg0, %c0_i32 : i32, i32
  }
}

</mosaic_0001>

<llo_original>
// kernel: tpu_custom_call.1
$region0: #{tpu_custom_call.1}
  #allocation0 [shape = 'u32[]', space=smem, size = 0x4, offset = 0x4, fixed_abs, tag = 'smem constant byte address 0x4 - core index']
  #allocation1 [shape = 'u32[144,128]{1,0:T(1,128)}', space=vmem, size = 0x12000, scoped, tag = 'internal scratch']
  %s0 = inlined_call_operand.hbm [shape: f32[8,32], index: 0, kind: input, shape index: {}]
  %s1 = inlined_call_operand.hbm [shape: f32[32,32], index: 1, kind: input, shape index: {}]
  %s2 = inlined_call_operand.vmem [shape: f32[3,32], index: 2, kind: input, shape index: {}]
  %s3 = inlined_call_operand.hbm [shape: f32[8,32], index: 3, kind: output, shape index: {}]
  %s4 = sld [smem:[#allocation0]]
  $region30: #{tpu_custom_call.1} parent=0
    _
  %s6 = ssub.s32 1, %s4
  %s7 = scalar_select 0, %s6, %s4
  $region1: #{tpu_custom_call.1} parent=0
    #allocation2 [shape = 'u8[4096]{0}', space=vmem, size = 0x1000, scoped, tag = 'input window, operand 0, single buffered']
    #allocation3 [shape = 's32[1]{0}', space=sflag, size = 0x4, scoped, tag = 'scoped memory for tpu_custom_call.1']
    #allocation4 [shape = 's32[1]{0}', space=sflag, size = 0x4, scoped, tag = 'scoped memory for tpu_custom_call.1']
    #allocation5 [shape = 'u8[16384]{0}', space=vmem, size = 0x4000, scoped, tag = 'input window, operand 1, single buffered']
    #allocation6 [shape = 's32[1]{0}', space=sflag, size = 0x4, scoped, tag = 'scoped memory for tpu_custom_call.1']
    #allocation7 [shape = 'u8[4096]{0}', space=vmem, size = 0x1000, scoped, tag = 'output window, operand 0, single buffered']
    %8 = vsyncpa [#allocation3], 0
    %9 = vsyncpa [#allocation6], 0
    %10 = vsyncpa [#allocation4], 0
    // Predicated region
    $region2: #{tpu_custom_call.1} parent=1 // pred_check
      _
    $region3: #{tpu_custom_call.1} parent=1 // pred_check_branch
      %12 = sbr.rel (0) target = $region5
    $region4: #{tpu_custom_call.1} parent=1 // pred_region
      %s14 = ssub.s32 128, 128
      %15 = vsyncadd [#allocation3], %s14
      %s17 = sshll.u32 [#allocation2], 4
      %s18 = int_to_ptr.vmem [resolvable:$true] %s17
      %20 = dma.hbm_to_vmem [thread:$0]  %s0, 128, %s18, [#allocation3]
    $region5: #{tpu_custom_call.1} parent=1 // pred_fallthru
      _
    // Predicated region
    $region6: #{tpu_custom_call.1} parent=1 // pred_check
      _
    $region7: #{tpu_custom_call.1} parent=1 // pred_check_branch
      %22 = sbr.rel (0) target = $region9
    $region8: #{tpu_custom_call.1} parent=1 // pred_region
      %s24 = ssub.s32 512, 512
      %25 = vsyncadd [#allocation6], %s24
      %s26 = sshll.u32 [#allocation5], 4
      %s27 = int_to_ptr.vmem [resolvable:$true] %s26
      %32 = dma.hbm_to_vmem [thread:$0]  %s1, 512, %s27, [#allocation6], 128, 128, 8
    $region9: #{tpu_custom_call.1} parent=1 // pred_fallthru
      _
    // Predicated region
    $region10: #{tpu_custom_call.1} parent=1 // pred_check
      _
    $region11: #{tpu_custom_call.1} parent=1 // pred_check_branch
      %34 = sbr.rel (0) target = $region13
    $region12: #{tpu_custom_call.1} parent=1 // pred_region
      _
    $region13: #{tpu_custom_call.1} parent=1 // pred_fallthru
      _
    // Predicated region
    $region14: #{tpu_custom_call.1} parent=1 // pred_check
      _
    $region15: #{tpu_custom_call.1} parent=1 // pred_check_branch
      %36 = sbr.rel (0) target = $region17
    $region16: #{tpu_custom_call.1} parent=1 // pred_region
      %37 = dma.done [#allocation3], 128
    $region17: #{tpu_custom_call.1} parent=1 // pred_fallthru
      _
    // Predicated region
    $region18: #{tpu_custom_call.1} parent=1 // pred_check
      _
    $region19: #{tpu_custom_call.1} parent=1 // pred_check_branch
      %39 = sbr.rel (0) target = $region21
    $region20: #{tpu_custom_call.1} parent=1 // pred_region
      %40 = dma.done [#allocation6], 512
    $region21: #{tpu_custom_call.1} parent=1 // pred_fallthru
      _
    %v41 = vld [vmem:[#allocation2] sm:$0xff]
    %v42 = vld [vmem:[#allocation5] sm:$0xff]
    %v43 = vld [vmem:[#allocation5 + $0x8] sm:$0xff]
    %v44 = vld [vmem:[#allocation5 + $0x10] sm:$0xff]
    %v45 = vld [vmem:[#allocation5 + $0x18] sm:$0xff]
    %v46 = vld [vmem:[%s2] sm:$0x1]
    %v47 = vlaneseq
    %v48 = vshrl.u32 %v47, 7
    %v49 = vsub.s32 0, %v48
    %v50 = vrot.slane %v46, %v49
    %vm51 = vcmask 261120
    %v53 = vsel %vm51, %v41, 0
    %55 = vmatprep.subr.mxu0 0.0
    %56 = vmatpush1.msra.mxu0 %v42
    %57 = vmatprep.subr.mxu0 0.0
    %58 = vmatpush1.msra.mxu0 %v43
    %59 = vmatprep.subr.mxu0 0.0
    %60 = vmatpush1.msra.mxu0 %v44
    %61 = vmatprep.subr.mxu0 0.0
    %62 = vmatpush1.msra.mxu0 %v45
    %63 = vmatprep.subr.mxu0 0.0
    %64 = vmatpush1.msra.mxu0 0.0
    %65 = vmatprep.subr.mxu0 0.0
    %66 = vmatpush1.msra.mxu0 0.0
    %67 = vmatprep.subr.mxu0 0.0
    %68 = vmatpush1.msra.mxu0 0.0
    %69 = vmatprep.subr.mxu0 0.0
    %70 = vmatpush1.msra.mxu0 0.0
    %71 = vmatprep.subr.mxu0 0.0
    %72 = vmatpush1.msra.mxu0 0.0
    %73 = vmatprep.subr.mxu0 0.0
    %74 = vmatpush1.msra.mxu0 0.0
    %75 = vmatprep.subr.mxu0 0.0
    %76 = vmatpush1.msra.mxu0 0.0
    %77 = vmatprep.subr.mxu0 0.0
    %78 = vmatpush1.msra.mxu0 0.0
    %79 = vmatprep.subr.mxu0 0.0
    %80 = vmatpush1.msra.mxu0 0.0
    %81 = vmatprep.subr.mxu0 0.0
    %82 = vmatpush1.msra.mxu0 0.0
    %83 = vmatprep.subr.mxu0 0.0
    %84 = vmatpush1.msra.mxu0 0.0
    %85 = vmatprep.subr.mxu0 0.0
    %86 = vmatpush1.msra.mxu0 0.0
    %87 = vmatprep.subr.mxu0 0.0
    %88 = vmatpush1.msra.mxu0 0.0
    %89 = vmatprep.subr.mxu0 0.0
    %90 = vmatpush1.msra.mxu0 0.0
    %91 = vmatprep.subr.mxu0 0.0
    %92 = vmatpush1.msra.mxu0 0.0
    %93 = vmatprep.subr.mxu0 0.0
    %94 = vmatpush1.msra.mxu0 0.0
    %95 = vmatprep.subr.mxu0 0.0
    %96 = vmatpush1.msra.mxu0 0.0
    %97 = vmatprep.subr.mxu0 0.0
    %98 = vmatpush1.msra.mxu0 0.0
    %99 = vmatprep.subr.mxu0 0.0
    %100 = vmatpush1.msra.mxu0 0.0
    %101 = vmatprep.subr.mxu0 0.0
    %102 = vmatpush1.msra.mxu0 0.0
    %103 = vmatprep.subr.mxu0 0.0
    %104 = vmatpush1.msra.mxu0 0.0
    %105 = vmatprep.subr.mxu0 0.0
    %106 = vmatpush1.msra.mxu0 0.0
    %107 = vmatprep.subr.mxu0 0.0
    %108 = vmatpush1.msra.mxu0 0.0
    %109 = vmatprep.subr.mxu0 0.0
    %110 = vmatpush1.msra.mxu0 0.0
    %111 = vmatprep.subr.mxu0 0.0
    %112 = vmatpush1.msra.mxu0 0.0
    %113 = vmatprep.subr.mxu0 0.0
    %114 = vmatpush1.msra.mxu0 0.0
    %115 = vmatprep.subr.mxu0 0.0
    %116 = vmatpush1.msra.mxu0 0.0
    %117 = vmatprep.subr.mxu0 0.0
    %118 = vmatpush1.msra.mxu0 0.0
    %119 = vmatprep.mubr.f32.mxu0 0.0
    %120 = vmatmul.mubr.f32.gmra.mrb[0].mxu0 %v53
    %v121 = vpop.f32.mrb[0].mxu0
    %v122 = vadd.f32 %v50, %v121
    %v123 = vpop.f32.mrb[0].mxu0
    %124 = vdwg.mxu0
    %v125 = vsel %vm51, %v122, 0.0
    %126 = vadd.xlane.f32.xlu0 %v125
    %v127 = vpop.xlane.xlu0 %126
    %v128 = vrcp.pop 32.0
    %v129 = vmul.f32 %v127, %v128
    %v130 = vsub.f32 %v122, %v129
    %v131 = vmul.f32 %v130, %v130
    %v132 = vsel %vm51, %v131, 0.0
    %133 = vadd.xlane.f32.xlu0 %v132
    %v134 = vpop.xlane.xlu0 %133
    %v135 = vmul.f32 %v134, %v128
    %v136 = vadd.f32 %v135, 1e-05
    %v137 = vrsqrt.pop %v136
    %v138 = vmul.f32 %v130, %v137
    %v139 = vld [vmem:[%s2 + $0x1] sm:$0x1]
    %v140 = vlaneseq
    %v141 = vshrl.u32 %v140, 7
    %v142 = vsub.s32 0, %v141
    %v143 = vrot.slane %v139, %v142
    %v144 = vmul.f32 %v138, %v143
    %v145 = vld [vmem:[%s2 + $0x2] sm:$0x1]
    %v146 = vlaneseq
    %v147 = vshrl.u32 %v146, 7
    %v148 = vsub.s32 0, %v147
    %v149 = vrot.slane %v145, %v148
    %v150 = vadd.f32 %v144, %v149
    %v151 = vtanh.pop %v150
    %152 = vst.msk [vmem:[#allocation7] sm:$0xff] %vm51, %v151
    // Predicated region
    $region22: #{tpu_custom_call.1} parent=1 // pred_check
      _
    $region23: #{tpu_custom_call.1} parent=1 // pred_check_branch
      %154 = sbr.rel (0) target = $region25
    $region24: #{tpu_custom_call.1} parent=1 // pred_region
      %s156 = ssub.s32 128, 128
      %157 = vsyncadd [#allocation4], %s156
      %s159 = sshll.u32 [#allocation7], 4
      %s160 = int_to_ptr.vmem [resolvable:$true] %s159
      %162 = dma.vmem_to_hbm [thread:$0]  %s160, 128, %s3, [#allocation4]
    $region25: #{tpu_custom_call.1} parent=1 // pred_fallthru
      _
    // Predicated region
    $region26: #{tpu_custom_call.1} parent=1 // pred_check
      _
    $region27: #{tpu_custom_call.1} parent=1 // pred_check_branch
      %164 = sbr.rel (0) target = $region29
    $region28: #{tpu_custom_call.1} parent=1 // pred_region
      %165 = dma.done [#allocation4], 128
    $region29: #{tpu_custom_call.1} parent=1 // pred_fallthru
      _
    %166 = vsyncpa [#allocation3], 1
    %167 = vsyncpa [#allocation6], 1
    %168 = vsyncpa [#allocation4], 1

</llo_original>
